<compile_context>
chip_gen: v6e
topology: v6e:2x2x1
jax: 0.10.0
libtpu: 0.0.40
codegen_flags: <defaults>
</compile_context>

<pallas_src>
import numpy as np

import jax
import jax.numpy as jnp
from jax.experimental import pallas as pl
from jax.experimental.pallas import tpu as pltpu

_SQRT_HALF = 0.7071067811865476
_COMPUTE_DTYPE = jnp.bfloat16       # MXU feed / inter-block storage dtype


def _gelu(x):
    # Exact erf-based GELU (PyTorch F.gelu default).
    return 0.5 * x * (1.0 + jax.lax.erf(x * _SQRT_HALF))


def _round_up(a, m):
    return (a + m - 1) // m * m


def _conv_geom(kernel_size, dilation):
    rf = (kernel_size - 1) * dilation + 1
    return rf // 2, rf - 1          # (pad, ext)


def _vmem_capacity_bytes():
    try:
        return int(pltpu.get_tpu_info().vmem_capacity_bytes)
    except Exception:
        return 64 * 1024 * 1024     # conservative (v7x per-TC)


def _pick_tile(valid_len, pad, ext, K, cin_p, cout_p, tile_l, budget):
    """Lane-dense length tile, >= ~4*ext so halo recompute stays bounded,
    shrunk while the in-kernel temporaries would exceed the VMEM budget."""
    tl = _round_up(max(tile_l, 4 * ext, 128), 128)
    tl = min(tl, _round_up(max(valid_len, 1), 128))
    cp = _round_up(2 * pad, 128)

    def tmp_bytes(t):
        xw = t + 2 * ext + (cp - 2 * pad)
        hw = t + ext
        return (cin_p * xw * 6 + K * cin_p * hw * 2
                + cout_p * hw * 6 + K * cout_p * t * 2 + cout_p * t * 12)

    while tl > 128 and tmp_bytes(tl) > budget:
        tl -= 128
    return tl


def _footprint_bytes(*, TL, pad, ext, CP, K, cin_p, cout_p, lin,
                     in_bytes, out_bytes, has_proj):
    xw = TL + 2 * ext + (CP - 2 * pad)
    hw = TL + ext
    row = 2 * cin_p * lin * in_bytes                       # pipelined x row
    out_t = 2 * cout_p * TL * out_bytes                    # pipelined out tile
    w = 2 * 2 * (cout_p * K * cin_p + cout_p * K * cout_p
                 + (cout_p * cin_p if has_proj else 0)) + 6 * 4 * cout_p
    tmp = (cin_p * xw * 6 + K * cin_p * hw * 2 + cout_p * hw * 6
           + K * cout_p * TL * 2 + cout_p * TL * 12)
    return row + out_t + w + tmp


# ----------------------------------------------------------------------------
# Fused ConvBlock kernel
# ----------------------------------------------------------------------------
def _make_block_kernel(*, K, dilation, TL, L_valid, pad, ext, CP, AIN, AOUT,
                       has_proj, compute_dtype):
    DL = CP - 2 * pad               # alignment slack at the left of the window
    XW = TL + 2 * ext + DL          # raw-x window per output tile (128-aligned)
    HW = TL + ext                   # conv1-output window needed by conv2

    def kernel(x_ref, w1_ref, b1_ref, w2_ref, b2_ref, *rest):
        if has_proj:
            wp_ref, bp_ref, out_ref = rest
        else:
            (out_ref,) = rest

        lt = pl.program_id(1)
        q0 = lt * TL - AOUT                      # original coord of column 0
        live = jnp.logical_and(q0 >= 0, q0 < L_valid)

        # Halo tiles (entirely outside [0, L_valid)): just write zeros — these
        # are the zero halo columns the next block relies on.
        @pl.when(jnp.logical_not(live))
        def _():
            out_ref[...] = jnp.zeros(out_ref.shape, out_ref.dtype)

        @pl.when(live)
        def _():
            # 128-aligned window load (AIN, q0, CP are all multiples of 128).
            start = pl.multiple_of(AIN + q0 - CP, 128)
            xw = x_ref[:, pl.ds(start, XW)].astype(jnp.float32)   # (Cin_p, XW)

            # ---- conv1: gelu(x) -> dilated conv (merged-tap single matmul) --
            gx = _gelu(xw).astype(compute_dtype)  # gelu(0)=0 => exact zero halo
            xk1 = jnp.concatenate(
                [gx[:, DL + k * dilation:DL + k * dilation + HW]
                 for k in range(K)], axis=0)
            h = jnp.dot(w1_ref[...], xk1,
                        preferred_element_type=jnp.float32) + b1_ref[...]

            # conv1 output only exists on [0, L_valid); zero elsewhere (this is
            # SamePadConv's zero padding for conv2 and the even-rf trim).
            j = jax.lax.broadcasted_iota(jnp.int32, (1, HW), 1) + (q0 - pad)
            gh = jnp.where(jnp.logical_and(j >= 0, j < L_valid),
                           _gelu(h), 0.0).astype(compute_dtype)

            # ---- conv2: gelu(h) -> dilated conv (merged-tap single matmul) --
            xk2 = jnp.concatenate(
                [gh[:, k * dilation:k * dilation + TL] for k in range(K)],
                axis=0)
            y = jnp.dot(w2_ref[...], xk2,
                        preferred_element_type=jnp.float32) + b2_ref[...]

            # ---- residual: raw x (optionally 1x1-projected, bf16 MXU feed) --
            xr = xw[:, CP:CP + TL]
            if has_proj:
                res = jnp.dot(wp_ref[...], xr.astype(compute_dtype),
                              preferred_element_type=jnp.float32) + bp_ref[...]
            else:
                res = xr

            # Zero past the true length so the next block sees an exact halo.
            i = jax.lax.broadcasted_iota(jnp.int32, (1, TL), 1) + q0
            out_ref[...] = jnp.where(i < L_valid, y + res, 0.0).astype(
                out_ref.dtype)

    return kernel


# ----------------------------------------------------------------------------
# ConvBlock wrapper (one pallas_call per block)
# ----------------------------------------------------------------------------
def conv_block(x_store, bp, *, valid_len, TL, AIN, AOUT, Lout, out_dtype,
               compute_dtype=_COMPUTE_DTYPE):
    N, cin_p, lin = x_store.shape
    assert cin_p == bp["cin_p"], (cin_p, bp["cin_p"])
    K, dil = bp["K"], bp["dilation"]
    cout_p, has_proj = bp["cout_p"], bp["has_proj"]
    pad, ext = _conv_geom(K, dil)
    CP = _round_up(2 * pad, 128)

    assert AIN >= CP, (AIN, CP)
    assert AOUT % TL == 0 and Lout % TL == 0, (AOUT, Lout, TL)
    assert lin >= AIN + _round_up(valid_len, TL) + 2 * (ext - pad), \
        (lin, AIN, valid_len, TL, ext, pad)
    nL = Lout // TL

    kernel = _make_block_kernel(K=K, dilation=dil, TL=TL, L_valid=valid_len,
                                pad=pad, ext=ext, CP=CP, AIN=AIN, AOUT=AOUT,
                                has_proj=has_proj, compute_dtype=compute_dtype)

    in_specs = [
        pl.BlockSpec((None, cin_p, lin), lambda n, lt: (n, 0, 0)),
        pl.BlockSpec((cout_p, K * cin_p), lambda n, lt: (0, 0)),
        pl.BlockSpec((cout_p, 1), lambda n, lt: (0, 0)),
        pl.BlockSpec((cout_p, K * cout_p), lambda n, lt: (0, 0)),
        pl.BlockSpec((cout_p, 1), lambda n, lt: (0, 0)),
    ]
    args = [x_store, bp["w1f"], bp["b1c"], bp["w2f"], bp["b2c"]]
    if has_proj:
        in_specs += [pl.BlockSpec((cout_p, cin_p), lambda n, lt: (0, 0)),
                     pl.BlockSpec((cout_p, 1), lambda n, lt: (0, 0))]
        args += [bp["wpf"], bp["bpc"]]

    fp = _footprint_bytes(TL=TL, pad=pad, ext=ext, CP=CP, K=K, cin_p=cin_p,
                          cout_p=cout_p, lin=lin,
                          in_bytes=np.dtype(x_store.dtype).itemsize,
                          out_bytes=np.dtype(out_dtype).itemsize,
                          has_proj=has_proj)
    cap = _vmem_capacity_bytes()
    vmem_limit = int(min(max(2 * fp + (16 << 20), 48 << 20),
                         120 << 20, cap * 7 // 8))

    return pl.pallas_call(
        kernel,
        out_shape=jax.ShapeDtypeStruct((N, cout_p, Lout), out_dtype),
        grid=(N, nL),
        in_specs=in_specs,
        out_specs=pl.BlockSpec((None, cout_p, TL), lambda n, lt: (n, 0, lt)),
        compiler_params=pltpu.CompilerParams(
            dimension_semantics=("parallel", "parallel"),
            vmem_limit_bytes=vmem_limit),
    )(*args)


# ----------------------------------------------------------------------------
# One-time weight preparation (pad / flatten taps / cast) — outside fwd path
# ----------------------------------------------------------------------------
def prepare_encoder_params(params, kernel_size, compute_dtype=_COMPUTE_DTYPE):
    prepared = []
    prev_cout_p = None
    for p in params:
        w1, b1, w2, b2, wp, bpv = (p["w1"], p["b1"], p["w2"], p["b2"],
                                   p["wp"], p["bp"])
        cout, cin, K = w1.shape
        assert K == kernel_size
        has_proj = wp is not None
        cin_p = prev_cout_p if prev_cout_p is not None else _round_up(cin, 16)
        cout_p = _round_up(cout, 16)
        if not has_proj:
            assert cin == cout and cin_p == cout_p

        # Merged-tap layout: (Cout_p, K*Cin_p), [co, k*Cin_p + ci] = w[co, ci, k].
        w1p = jnp.pad(w1, ((0, cout_p - cout), (0, cin_p - cin), (0, 0)))
        w2p = jnp.pad(w2, ((0, cout_p - cout), (0, cout_p - cout), (0, 0)))
        blk = dict(
            K=K, dilation=p["dilation"], cin=cin, cout=cout,
            cin_p=cin_p, cout_p=cout_p, has_proj=has_proj,
            w1f=w1p.transpose(0, 2, 1).reshape(cout_p, K * cin_p)
                 .astype(compute_dtype),
            w2f=w2p.transpose(0, 2, 1).reshape(cout_p, K * cout_p)
                 .astype(compute_dtype),
            b1c=jnp.pad(b1, (0, cout_p - cout)).reshape(cout_p, 1)
                 .astype(jnp.float32),
            b2c=jnp.pad(b2, (0, cout_p - cout)).reshape(cout_p, 1)
                 .astype(jnp.float32),
        )
        if has_proj:
            blk["wpf"] = jnp.pad(wp[:, :, 0],
                                 ((0, cout_p - cout), (0, cin_p - cin))
                                 ).astype(compute_dtype)
            blk["bpc"] = jnp.pad(bpv, (0, cout_p - cout)).reshape(cout_p, 1
                                 ).astype(jnp.float32)
        prepared.append(blk)
        prev_cout_p = cout_p
    return prepared


# ----------------------------------------------------------------------------
# DilatedConvEncoder forward
# ----------------------------------------------------------------------------
def dilated_conv_encoder(x, prepared, *, tile_l=None,
                         compute_dtype=_COMPUTE_DTYPE):
    N, c_in, L = x.shape
    B = len(prepared)
    cap = _vmem_capacity_bytes()
    if tile_l is None:
        tile_l = 512 if cap <= (64 << 20) else 1024     # v7x vs v6e/v5e
    budget = min(cap // 3, 40 << 20)

    # Per-block geometry & adaptive length tiles (needed up-front because each
    # block writes its output in the NEXT block's haloed storage layout).
    plan = []
    for bp in prepared:
        pad, ext = _conv_geom(bp["K"], bp["dilation"])
        TL = _pick_tile(L, pad, ext, bp["K"], bp["cin_p"], bp["cout_p"],
                        tile_l, budget)
        plan.append(dict(pad=pad, ext=ext, TL=TL,
                         Lceil=_round_up(max(L, 1), TL)))

    # Block-0 input in its haloed layout (the only host-side pad: tiny input).
    cin_p0 = prepared[0]["cin_p"]
    AIN = _round_up(2 * plan[0]["pad"], 128)
    Lin = _round_up(AIN + plan[0]["Lceil"]
                    + 2 * (plan[0]["ext"] - plan[0]["pad"]), 128)
    h = jnp.pad(x, ((0, 0), (0, cin_p0 - c_in), (AIN, Lin - AIN - L)))

    for i, (bp, geo) in enumerate(zip(prepared, plan)):
        if i + 1 < B:
            nxt = plan[i + 1]
            AOUT = _round_up(2 * nxt["pad"], geo["TL"])
            Lout = _round_up(AOUT + nxt["Lceil"]
                             + 2 * (nxt["ext"] - nxt["pad"]), geo["TL"])
            out_dtype = compute_dtype           # bf16 inter-block activations
        else:
            AOUT = 0
            Lout = geo["Lceil"]
            out_dtype = x.dtype
        h = conv_block(h, bp, valid_len=L, TL=geo["TL"], AIN=AIN, AOUT=AOUT,
                       Lout=Lout, out_dtype=out_dtype,
                       compute_dtype=compute_dtype)
        AIN = AOUT
    return h[:, :prepared[-1]["cout"], :L]      # single trim of padding


# ----------------------------------------------------------------------------
# Deterministic parameter init (mimics PyTorch Conv1d default uniform init)
# ----------------------------------------------------------------------------
def _init_conv(key, out_ch, in_ch, K):
    k1, k2 = jax.random.split(key)
    bound = 1.0 / (in_ch * K) ** 0.5
    w = jax.random.uniform(k1, (out_ch, in_ch, K), jnp.float32, -bound, bound)
    b = jax.random.uniform(k2, (out_ch,), jnp.float32, -bound, bound)
    return w, b


def init_encoder_params(key, in_channels, channels, kernel_size):
    params = []
    for i, out_ch in enumerate(channels):
        in_ch = channels[i - 1] if i > 0 else in_channels
        final = i == len(channels) - 1
        key, k1, k2, k3 = jax.random.split(key, 4)
        w1, b1 = _init_conv(k1, out_ch, in_ch, kernel_size)
        w2, b2 = _init_conv(k2, out_ch, out_ch, kernel_size)
        if in_ch != out_ch or final:
            wp, bp = _init_conv(k3, out_ch, in_ch, 1)
        else:
            wp, bp = None, None
        params.append(dict(w1=w1, b1=b1, w2=w2, b2=b2, wp=wp, bp=bp,
                           dilation=2 ** i))
    return params


# ----------------------------------------------------------------------------
# Pure-JAX reference (same bf16 feed / bf16 inter-block storage as the kernel)
# ----------------------------------------------------------------------------
def _ref_same_pad_conv(x, w, b, *, dilation, compute_dtype):
    N, C, L = x.shape
    Cout, _, K = w.shape
    rf = (K - 1) * dilation + 1
    pad = rf // 2
    remove = 1 if rf % 2 == 0 else 0
    hp = jnp.pad(x, ((0, 0), (0, 0), (pad, pad)))
    hp = hp.astype(compute_dtype).astype(jnp.float32)
    wq = w.astype(compute_dtype).astype(jnp.float32)
    Lout = L + 2 * pad - rf + 1
    out = jnp.zeros((N, Cout, Lout), jnp.float32) + b[None, :, None]
    for k in range(K):
        out = out + jnp.einsum(
            "oc,ncl->nol", wq[:, :, k],
            hp[:, :, k * dilation:k * dilation + Lout],
            precision=jax.lax.Precision.HIGHEST)
    if remove:
        out = out[:, :, :-remove]
    return out


def _ref_block(x, p, compute_dtype):
    if p["wp"] is not None:
        wq = p["wp"][:, :, 0].astype(compute_dtype).astype(jnp.float32)
        xq = x.astype(compute_dtype).astype(jnp.float32)
        res = jnp.einsum("oc,ncl->nol", wq, xq,
                         precision=jax.lax.Precision.HIGHEST) \
              + p["bp"][None, :, None]
    else:
        res = x
    h = _ref_same_pad_conv(_gelu(x), p["w1"], p["b1"],
                           dilation=p["dilation"], compute_dtype=compute_dtype)
    y = _ref_same_pad_conv(_gelu(h), p["w2"], p["b2"],
                           dilation=p["dilation"], compute_dtype=compute_dtype)
    return y + res


def _ref_encoder(x, params, compute_dtype):
    h = x
    n = len(params)
    for i, p in enumerate(params):
        h = _ref_block(h, p, compute_dtype)
        if i + 1 < n:                      # bf16 inter-block storage, like kernel
            h = h.astype(compute_dtype).astype(jnp.float32)
    return h


# ----------------------------------------------------------------------------
if __name__ == "__main__":
    # --- test 1: module-default small shapes (K=3, odd receptive fields) ---
    in_channels, channels, kernel_size = 4, [8, 8, 16], 3
    N, L = 2, 16
    key = jax.random.PRNGKey(0)
    kx, kp, kx2, kp2 = jax.random.split(key, 4)
    x = jax.random.normal(kx, (N, in_channels, L), dtype=jnp.float32)
    params = init_encoder_params(kp, in_channels, channels, kernel_size)
    prepared = prepare_encoder_params(params, kernel_size)

    out = jax.block_until_ready(dilated_conv_encoder(x, prepared))
    assert out.shape == (N, channels[-1], L), out.shape
    assert bool(jnp.all(jnp.isfinite(out)))
    ref = _ref_encoder(x, params, _COMPUTE_DTYPE)
    err = float(jnp.max(jnp.abs(out - ref)))
    assert err < 5e-2, f"test1 max abs err {err}"

    # --- test 2: multi-tile length path + even receptive field (K=2) ---
    in2, ch2, k2 = 6, [8, 16], 2
    x2 = jax.random.normal(kx2, (1, in2, 300), dtype=jnp.float32)
    params2 = init_encoder_params(kp2, in2, ch2, k2)
    prepared2 = prepare_encoder_params(params2, k2)
    out2 = jax.block_until_ready(
        dilated_conv_encoder(x2, prepared2, tile_l=128))
    assert out2.shape == (1, ch2[-1], 300), out2.shape
    ref2 = _ref_encoder(x2, params2, _COMPUTE_DTYPE)
    err2 = float(jnp.max(jnp.abs(out2 - ref2)))
    assert err2 < 5e-2, f"test2 max abs err {err2}"

    print("KERNEL_OK")
</pallas_src>

<mosaic_0001>
module attributes {stable_mosaic.version = 11 : i64} {
  func.func @kernel(%arg0: i32, %arg1: i32, %arg2: memref<1x16x384xf32, #tpu.memory_space<vmem>>, %arg3: memref<16x48xbf16, #tpu.memory_space<vmem>>, %arg4: memref<16x1xf32, #tpu.memory_space<vmem>>, %arg5: memref<16x48xbf16, #tpu.memory_space<vmem>>, %arg6: memref<16x1xf32, #tpu.memory_space<vmem>>, %arg7: memref<16x16xbf16, #tpu.memory_space<vmem>>, %arg8: memref<16x1xf32, #tpu.memory_space<vmem>>, %arg9: memref<1x16x128xbf16, #tpu.memory_space<vmem>>) attributes {dimension_semantics = [#tpu.dimension_semantics<parallel>, #tpu.dimension_semantics<parallel>], iteration_bounds = array<i64: 2, 3>, scalar_prefetch = 0 : i64, scratch_operands = 0 : i64, tpu.core_type = #tpu.core_type<tc>, window_params = [{transform_indices = @transform_0, window_bounds = array<i64: 1, 16, 384>}, {pipeline_mode = #tpu.pipeline_mode<synchronous>, transform_indices = @transform_1, window_bounds = array<i64: 16, 48>}, {pipeline_mode = #tpu.pipeline_mode<synchronous>, transform_indices = @transform_2, window_bounds = array<i64: 16, 1>}, {pipeline_mode = #tpu.pipeline_mode<synchronous>, transform_indices = @transform_3, window_bounds = array<i64: 16, 48>}, {pipeline_mode = #tpu.pipeline_mode<synchronous>, transform_indices = @transform_4, window_bounds = array<i64: 16, 1>}, {pipeline_mode = #tpu.pipeline_mode<synchronous>, transform_indices = @transform_5, window_bounds = array<i64: 16, 16>}, {pipeline_mode = #tpu.pipeline_mode<synchronous>, transform_indices = @transform_6, window_bounds = array<i64: 16, 1>}, {transform_indices = @transform_7, window_bounds = array<i64: 1, 16, 128>}]} {
    %c128_i32 = arith.constant 128 : i32
    %0 = arith.muli %arg1, %c128_i32 : i32
    %c128_i32_0 = arith.constant 128 : i32
    %1 = arith.subi %0, %c128_i32_0 : i32
    %c0_i32 = arith.constant 0 : i32
    %2 = arith.cmpi sge, %1, %c0_i32 : i32
    %c16_i32 = arith.constant 16 : i32
    %3 = arith.cmpi slt, %1, %c16_i32 : i32
    %4 = arith.andi %2, %3 : i1
    %true = arith.constant true
    %5 = arith.xori %4, %true : i1
    %6 = arith.extui %5 : i1 to i32
    %c0_i32_1 = arith.constant 0 : i32
    %7 = arith.cmpi ne, %6, %c0_i32_1 : i32
    scf.if %7 {
      %cst = arith.constant 0.000000e+00 : bf16
      %10 = vector.broadcast %cst : bf16 to vector<16x128xbf16>
      %c0 = arith.constant 0 : index
      %c0_3 = arith.constant 0 : index
      %c0_4 = arith.constant 0 : index
      %11 = vector.load %arg9[%c0, %c0_3, %c0_4] : memref<1x16x128xbf16, #tpu.memory_space<vmem>>, vector<1x16x128xbf16>
      %12 = vector.shape_cast %11 : vector<1x16x128xbf16> to vector<16x128xbf16>
      %13 = vector.shape_cast %10 : vector<16x128xbf16> to vector<1x16x128xbf16>
      tpu.vector_store %arg9[%c0, %c0_3, %c0_4], %13 {strides = array<i32>} : memref<1x16x128xbf16, #tpu.memory_space<vmem>>, vector<1x16x128xbf16>,
    } else {
    }
    %8 = arith.extui %4 : i1 to i32
    %c0_i32_2 = arith.constant 0 : i32
    %9 = arith.cmpi ne, %8, %c0_i32_2 : i32
    scf.if %9 {
      %c128_i32_3 = arith.constant 128 : i32
      %10 = arith.addi %c128_i32_3, %1 : i32
      %c128_i32_4 = arith.constant 128 : i32
      %11 = arith.subi %10, %c128_i32_4 : i32
      %12 = tpu.assume_multiple %11, 128 : i32
      %c0 = arith.constant 0 : index
      %c0_5 = arith.constant 0 : index
      %13 = arith.index_cast %12 : i32 to index
      %14 = vector.load %arg2[%c0, %c0_5, %13] : memref<1x16x384xf32, #tpu.memory_space<vmem>>, vector<1x16x258xf32>
      %15 = vector.shape_cast %14 : vector<1x16x258xf32> to vector<16x258xf32>
      %cst = arith.constant 5.000000e-01 : f32
      %16 = vector.broadcast %cst : f32 to vector<16x258xf32>
      %17 = arith.mulf %16, %15 : vector<16x258xf32>
      %cst_6 = arith.constant 0.707106769 : f32
      %18 = vector.broadcast %cst_6 : f32 to vector<16x258xf32>
      %19 = arith.mulf %15, %18 : vector<16x258xf32>
      %20 = math.erf %19 : vector<16x258xf32>
      %cst_7 = arith.constant 1.000000e+00 : f32
      %21 = vector.broadcast %cst_7 : f32 to vector<16x258xf32>
      %22 = arith.addf %21, %20 : vector<16x258xf32>
      %23 = arith.mulf %17, %22 : vector<16x258xf32>
      %24 = arith.truncf %23 : vector<16x258xf32> to vector<16x258xbf16>
      %25 = vector.extract_strided_slice %24 {offsets = [0, 126], sizes = [16, 130], strides = [1, 1]} : vector<16x258xbf16> to vector<16x130xbf16>
      %26 = vector.extract_strided_slice %24 {offsets = [0, 127], sizes = [16, 130], strides = [1, 1]} : vector<16x258xbf16> to vector<16x130xbf16>
      %27 = vector.extract_strided_slice %24 {offsets = [0, 128], sizes = [16, 130], strides = [1, 1]} : vector<16x258xbf16> to vector<16x130xbf16>
      %28 = tpu.concatenate %25, %26, %27 in 0 : vector<16x130xbf16>, vector<16x130xbf16>, vector<16x130xbf16> -> vector<48x130xbf16>
      %c0_8 = arith.constant 0 : index
      %c0_9 = arith.constant 0 : index
      %29 = vector.load %arg3[%c0_8, %c0_9] : memref<16x48xbf16, #tpu.memory_space<vmem>>, vector<16x48xbf16>
      %cst_10 = arith.constant dense<0.000000e+00> : vector<16x130xf32>
      %30 = tpu.matmul %29, %28, %cst_10 {dimension_numbers = #tpu.dot_dimension_numbers<[1], [0], [0], [1], [0, 0, 1, 1], [], []>} : vector<16x48xbf16>, vector<48x130xbf16>, vector<16x130xf32> -> vector<16x130xf32>
      %c0_11 = arith.constant 0 : index
      %c0_12 = arith.constant 0 : index
      %31 = vector.load %arg4[%c0_11, %c0_12] : memref<16x1xf32, #tpu.memory_space<vmem>>, vector<16x1xf32>
      %32 = vector.broadcast %31 : vector<16x1xf32> to vector<16x130xf32>
      %33 = arith.addf %30, %32 : vector<16x130xf32>
      %34 = tpu.iota {dimensions = array<i32: 1>} : vector<1x130xi32>
      %c1_i32 = arith.constant 1 : i32
      %35 = arith.subi %1, %c1_i32 : i32
      %36 = vector.broadcast %35 : i32 to vector<1x130xi32>
      %37 = arith.addi %34, %36 : vector<1x130xi32>
      %c0_i32_13 = arith.constant 0 : i32
      %38 = vector.broadcast %c0_i32_13 : i32 to vector<1x130xi32>
      %39 = arith.cmpi sge, %37, %38 : vector<1x130xi32>
      %c16_i32_14 = arith.constant 16 : i32
      %40 = vector.broadcast %c16_i32_14 : i32 to vector<1x130xi32>
      %41 = arith.cmpi slt, %37, %40 : vector<1x130xi32>
      %42 = arith.andi %39, %41 : vector<1x130xi1>
      %cst_15 = arith.constant 5.000000e-01 : f32
      %43 = vector.broadcast %cst_15 : f32 to vector<16x130xf32>
      %44 = arith.mulf %43, %33 : vector<16x130xf32>
      %cst_16 = arith.constant 0.707106769 : f32
      %45 = vector.broadcast %cst_16 : f32 to vector<16x130xf32>
      %46 = arith.mulf %33, %45 : vector<16x130xf32>
      %47 = math.erf %46 : vector<16x130xf32>
      %cst_17 = arith.constant 1.000000e+00 : f32
      %48 = vector.broadcast %cst_17 : f32 to vector<16x130xf32>
      %49 = arith.addf %48, %47 : vector<16x130xf32>
      %50 = arith.mulf %44, %49 : vector<16x130xf32>
      %cst_18 = arith.constant 0.000000e+00 : f32
      %51 = vector.shape_cast %42 : vector<1x130xi1> to vector<1x130xi1>
      %52 = vector.broadcast %51 : vector<1x130xi1> to vector<16x130xi1>
      %53 = vector.broadcast %cst_18 : f32 to vector<16x130xf32>
      %54 = arith.select %52, %50, %53 : vector<16x130xi1>, vector<16x130xf32>
      %55 = arith.truncf %54 : vector<16x130xf32> to vector<16x130xbf16>
      %56 = vector.extract_strided_slice %55 {offsets = [0, 0], sizes = [16, 128], strides = [1, 1]} : vector<16x130xbf16> to vector<16x128xbf16>
      %57 = vector.extract_strided_slice %55 {offsets = [0, 1], sizes = [16, 128], strides = [1, 1]} : vector<16x130xbf16> to vector<16x128xbf16>
      %58 = vector.extract_strided_slice %55 {offsets = [0, 2], sizes = [16, 128], strides = [1, 1]} : vector<16x130xbf16> to vector<16x128xbf16>
      %59 = tpu.concatenate %56, %57, %58 in 0 : vector<16x128xbf16>, vector<16x128xbf16>, vector<16x128xbf16> -> vector<48x128xbf16>
      %c0_19 = arith.constant 0 : index
      %c0_20 = arith.constant 0 : index
      %60 = vector.load %arg5[%c0_19, %c0_20] : memref<16x48xbf16, #tpu.memory_space<vmem>>, vector<16x48xbf16>
      %cst_21 = arith.constant dense<0.000000e+00> : vector<16x128xf32>
      %61 = tpu.matmul %60, %59, %cst_21 {dimension_numbers = #tpu.dot_dimension_numbers<[1], [0], [0], [1], [0, 0, 1, 1], [], []>} : vector<16x48xbf16>, vector<48x128xbf16>, vector<16x128xf32> -> vector<16x128xf32>
      %c0_22 = arith.constant 0 : index
      %c0_23 = arith.constant 0 : index
      %62 = vector.load %arg6[%c0_22, %c0_23] : memref<16x1xf32, #tpu.memory_space<vmem>>, vector<16x1xf32>
      %63 = vector.broadcast %62 : vector<16x1xf32> to vector<16x128xf32>
      %64 = arith.addf %61, %63 : vector<16x128xf32>
      %65 = vector.extract_strided_slice %15 {offsets = [0, 128], sizes = [16, 128], strides = [1, 1]} : vector<16x258xf32> to vector<16x128xf32>
      %c0_24 = arith.constant 0 : index
      %c0_25 = arith.constant 0 : index
      %66 = vector.load %arg7[%c0_24, %c0_25] : memref<16x16xbf16, #tpu.memory_space<vmem>>, vector<16x16xbf16>
      %67 = arith.truncf %65 : vector<16x128xf32> to vector<16x128xbf16>
      %cst_26 = arith.constant dense<0.000000e+00> : vector<16x128xf32>
      %68 = tpu.matmul %66, %67, %cst_26 {dimension_numbers = #tpu.dot_dimension_numbers<[1], [0], [0], [1], [0, 0, 1, 1], [], []>} : vector<16x16xbf16>, vector<16x128xbf16>, vector<16x128xf32> -> vector<16x128xf32>
      %c0_27 = arith.constant 0 : index
      %c0_28 = arith.constant 0 : index
      %69 = vector.load %arg8[%c0_27, %c0_28] : memref<16x1xf32, #tpu.memory_space<vmem>>, vector<16x1xf32>
      %70 = vector.broadcast %69 : vector<16x1xf32> to vector<16x128xf32>
      %71 = arith.addf %68, %70 : vector<16x128xf32>
      %72 = tpu.iota {dimensions = array<i32: 1>} : vector<1x128xi32>
      %73 = vector.broadcast %1 : i32 to vector<1x128xi32>
      %74 = arith.addi %72, %73 : vector<1x128xi32>
      %c16_i32_29 = arith.constant 16 : i32
      %75 = vector.broadcast %c16_i32_29 : i32 to vector<1x128xi32>
      %76 = arith.cmpi slt, %74, %75 : vector<1x128xi32>
      %77 = arith.addf %64, %71 : vector<16x128xf32>
      %cst_30 = arith.constant 0.000000e+00 : f32
      %78 = vector.shape_cast %76 : vector<1x128xi1> to vector<1x128xi1>
      %79 = vector.broadcast %78 : vector<1x128xi1> to vector<16x128xi1>
      %80 = vector.broadcast %cst_30 : f32 to vector<16x128xf32>
      %81 = arith.select %79, %77, %80 : vector<16x128xi1>, vector<16x128xf32>
      %82 = arith.truncf %81 : vector<16x128xf32> to vector<16x128xbf16>
      %c0_31 = arith.constant 0 : index
      %c0_32 = arith.constant 0 : index
      %c0_33 = arith.constant 0 : index
      %83 = vector.load %arg9[%c0_31, %c0_32, %c0_33] : memref<1x16x128xbf16, #tpu.memory_space<vmem>>, vector<1x16x128xbf16>
      %84 = vector.shape_cast %83 : vector<1x16x128xbf16> to vector<16x128xbf16>
      %85 = vector.shape_cast %82 : vector<16x128xbf16> to vector<1x16x128xbf16>
      tpu.vector_store %arg9[%c0_31, %c0_32, %c0_33], %85 {strides = array<i32>} : memref<1x16x128xbf16, #tpu.memory_space<vmem>>, vector<1x16x128xbf16>,
    } else {
    }
    return
  }
  func.func @transform_0(%arg0: i32, %arg1: i32) -> (i32, i32, i32) {
    %c0_i32 = arith.constant 0 : i32
    %c0_i32_0 = arith.constant 0 : i32
    %c0_i32_1 = arith.constant 0 : i32
    return %arg0, %c0_i32, %c0_i32_0 : i32, i32, i32
  }
  func.func @transform_1(%arg0: i32, %arg1: i32) -> (i32, i32) {
    %c0_i32 = arith.constant 0 : i32
    %c0_i32_0 = arith.constant 0 : i32
    %c0_i32_1 = arith.constant 0 : i32
    return %c0_i32, %c0_i32_0 : i32, i32
  }
  func.func @transform_2(%arg0: i32, %arg1: i32) -> (i32, i32) {
    %c0_i32 = arith.constant 0 : i32
    %c0_i32_0 = arith.constant 0 : i32
    %c0_i32_1 = arith.constant 0 : i32
    return %c0_i32, %c0_i32_0 : i32, i32
  }
  func.func @transform_3(%arg0: i32, %arg1: i32) -> (i32, i32) {
    %c0_i32 = arith.constant 0 : i32
    %c0_i32_0 = arith.constant 0 : i32
    %c0_i32_1 = arith.constant 0 : i32
    return %c0_i32, %c0_i32_0 : i32, i32
  }
  func.func @transform_4(%arg0: i32, %arg1: i32) -> (i32, i32) {
    %c0_i32 = arith.constant 0 : i32
    %c0_i32_0 = arith.constant 0 : i32
    %c0_i32_1 = arith.constant 0 : i32
    return %c0_i32, %c0_i32_0 : i32, i32
  }
  func.func @transform_5(%arg0: i32, %arg1: i32) -> (i32, i32) {
    %c0_i32 = arith.constant 0 : i32
    %c0_i32_0 = arith.constant 0 : i32
    %c0_i32_1 = arith.constant 0 : i32
    return %c0_i32, %c0_i32_0 : i32, i32
  }
  func.func @transform_6(%arg0: i32, %arg1: i32) -> (i32, i32) {
    %c0_i32 = arith.constant 0 : i32
    %c0_i32_0 = arith.constant 0 : i32
    %c0_i32_1 = arith.constant 0 : i32
    return %c0_i32, %c0_i32_0 : i32, i32
  }
  func.func @transform_7(%arg0: i32, %arg1: i32) -> (i32, i32, i32) {
    %c0_i32 = arith.constant 0 : i32
    %c0_i32_0 = arith.constant 0 : i32
    return %arg0, %c0_i32, %arg1 : i32, i32, i32
  }
}

</mosaic_0001>

<llo_original>
// kernel: tpu_custom_call.1
$region0: #{tpu_custom_call.1}
  #allocation0 [shape = 'u32[]', space=smem, size = 0x4, offset = 0x4, fixed_abs, tag = 'smem constant byte address 0x4 - core index']
  #allocation1 [shape = 'u32[144,128]{1,0:T(1,128)}', space=vmem, size = 0x12000, scoped, tag = 'internal scratch']
  %s0 = inlined_call_operand.hbm [shape: f32[2,16,384], index: 0, kind: input, shape index: {}]
  %s1 = inlined_call_operand.vmem [shape: bf16[16,48], index: 1, kind: input, shape index: {}]
  %s2 = inlined_call_operand.vmem [shape: f32[16,1], index: 2, kind: input, shape index: {}]
  %s3 = inlined_call_operand.vmem [shape: bf16[16,48], index: 3, kind: input, shape index: {}]
  %s4 = inlined_call_operand.vmem [shape: f32[16,1], index: 4, kind: input, shape index: {}]
  %s5 = inlined_call_operand.vmem [shape: bf16[16,16], index: 5, kind: input, shape index: {}]
  %s6 = inlined_call_operand.vmem [shape: f32[16,1], index: 6, kind: input, shape index: {}]
  %s7 = inlined_call_operand.hbm [shape: bf16[2,16,384], index: 7, kind: output, shape index: {}]
  %s8 = sld [smem:[#allocation0]]
  $region73: #{tpu_custom_call.1} parent=0
    _
  %s10 = ssub.s32 1, %s8
  %s11 = scalar_select 0, %s10, %s8
  $region1: #{tpu_custom_call.1} parent=0
    #allocation2 [shape = 'u8[49152]{0}', space=vmem, size = 0xc000, scoped, tag = 'input window, operand 0']
    #allocation3 [shape = 's32[2]{0}', space=sflag, size = 0x8, scoped, tag = 'scoped memory for tpu_custom_call.1']
    #allocation4 [shape = 's32[2]{0}', space=sflag, size = 0x8, scoped, tag = 'scoped memory for tpu_custom_call.1']
    #allocation5 [shape = 'u8[8192]{0}', space=vmem, size = 0x2000, scoped, tag = 'output window, operand 0']
    %12 = vsyncpa [#allocation3], 0
    %s13 = scalar_lea.sflag [#allocation3], 1
    %14 = vsyncpa %s13, 0
    %15 = vsyncpa [#allocation4], 0
    %s16 = scalar_lea.sflag [#allocation4], 1
    %17 = vsyncpa %s16, 0
    loop: start=0, step=1, limit=8
    $region2: #{tpu_custom_call.1} parent=1 // loop_pre_header
      _
    $region3: #{tpu_custom_call.1} parent=1 // loop_header
      %s19 = sphi 0, %s23
      %p20 = scmp.ge.s32.totalorder %s19, 8
      %s26 = sphi 0, %s38
      %s27 = sphi 0, %s34
      %s28 = sphi 0, %s26
      %s29 = sphi 0, %s27
      %s30 = sphi 0, %s28
      %s31 = sphi 0, %s29
      %s41 = sphi 0, %s43
      %s44 = sphi 0, %s41
      %s45 = sphi 0, %s44
      %s61 = sphi 0, %s45
      %s65 = sphi 0, %s65
      %s67 = sphi 0, %s65
      %s68 = sphi 0, %s67
      %s82 = sphi 0, %s68
      %s86 = sphi 0, %s86
      %s88 = sphi 0, %s86
      %s89 = sphi 0, %s88
      %s103 = sphi 0, %s89
      %s107 = sphi 0, %s107
      %s109 = sphi 0, %s107
      %s110 = sphi 0, %s109
      %s124 = sphi 0, %s110
      %s128 = sphi 0, %s128
      %s130 = sphi 0, %s128
      %s131 = sphi 0, %s130
      %s145 = sphi 0, %s131
      %s149 = sphi 0, %s149
      %s151 = sphi 0, %s149
      %s152 = sphi 0, %s151
      %s166 = sphi 0, %s152
      %s170 = sphi 0, %s170
      %s172 = sphi 0, %s170
      %s173 = sphi 0, %s172
      %s187 = sphi 0, %s173
      %s195 = sphi 0, %s197
      %s198 = sphi 0, %s195
      %s199 = sphi 0, %s198
      %s215 = sphi 0, %s199
    $region4: #{tpu_custom_call.1} parent=1 // loop_header_branch
      %22 = sbr.rel (%p20) target = $region8
    $region5: #{tpu_custom_call.1} parent=1 // loop_body
      %s24 = ssub.s32 %s19, 1
      %s25 = ssub.s32 %s19, 2
      %s32 = sadd.s32 1, %s27
      %p33 = scmp.ge.s32.totalorder %s32, 3
      %s34 = scalar_select %p33, 0, %s32
      %s35 = sadd.s32 1, %s26
      %s36 = scalar_select %p33, %s35, %s26
      %p37 = scmp.ge.s32.totalorder %s36, 2
      %s38 = scalar_select %p37, 0, %s36
      %s39 = ssub.s32 %s26, %s38
      %p40 = scmp.eq.s32.totalorder %s39, 0
      %s42 = sadd.s32 %s41, 1
      %s43 = scalar_select %p40, %s41, %s42
      %p46 = pneg %p40
      %p47 = scmp.eq.s32.totalorder %s19, 5
      %p48 = por %p46, %p47
      %p49 = scmp.ne.s32.totalorder %s41, %s44
      %p50 = scmp.eq.s32.totalorder %s19, 0
      %p51 = por %p49, %p50
      %p52 = scmp.ne.s32.totalorder %s41, %s44
      %p53 = scmp.eq.s32.totalorder %s24, 5
      %p54 = por %p52, %p53
      %p55 = scmp.ne.s32.totalorder %s44, %s45
      %p56 = scmp.eq.s32.totalorder %s24, 0
      %p57 = por %p55, %p56
      %p58 = scmp.ne.s32.totalorder %s44, %s45
      %p59 = scmp.eq.s32.totalorder %s25, 5
      %p60 = por %p58, %p59
      %p62 = scmp.ne.s32.totalorder %s45, %s61
      %p63 = scmp.eq.s32.totalorder %s25, 0
      %p64 = por %p62, %p63
      %s66 = sadd.s32 %s65, 1
      %p69 = scmp.eq.s32.totalorder %s19, 5
      %p70 = scmp.ne.s32.totalorder %s65, %s67
      %p71 = scmp.eq.s32.totalorder %s19, 0
      %p72 = por %p70, %p71
      %p73 = scmp.ne.s32.totalorder %s65, %s67
      %p74 = scmp.eq.s32.totalorder %s24, 5
      %p75 = por %p73, %p74
      %p76 = scmp.ne.s32.totalorder %s67, %s68
      %p77 = scmp.eq.s32.totalorder %s24, 0
      %p78 = por %p76, %p77
      %p79 = scmp.ne.s32.totalorder %s67, %s68
      %p80 = scmp.eq.s32.totalorder %s25, 5
      %p81 = por %p79, %p80
      %p83 = scmp.ne.s32.totalorder %s68, %s82
      %p84 = scmp.eq.s32.totalorder %s25, 0
      %p85 = por %p83, %p84
      %s87 = sadd.s32 %s86, 1
      %p90 = scmp.eq.s32.totalorder %s19, 5
      %p91 = scmp.ne.s32.totalorder %s86, %s88
      %p92 = scmp.eq.s32.totalorder %s19, 0
      %p93 = por %p91, %p92
      %p94 = scmp.ne.s32.totalorder %s86, %s88
      %p95 = scmp.eq.s32.totalorder %s24, 5
      %p96 = por %p94, %p95
      %p97 = scmp.ne.s32.totalorder %s88, %s89
      %p98 = scmp.eq.s32.totalorder %s24, 0
      %p99 = por %p97, %p98
      %p100 = scmp.ne.s32.totalorder %s88, %s89
      %p101 = scmp.eq.s32.totalorder %s25, 5
      %p102 = por %p100, %p101
      %p104 = scmp.ne.s32.totalorder %s89, %s103
      %p105 = scmp.eq.s32.totalorder %s25, 0
      %p106 = por %p104, %p105
      %s108 = sadd.s32 %s107, 1
      %p111 = scmp.eq.s32.totalorder %s19, 5
      %p112 = scmp.ne.s32.totalorder %s107, %s109
      %p113 = scmp.eq.s32.totalorder %s19, 0
      %p114 = por %p112, %p113
      %p115 = scmp.ne.s32.totalorder %s107, %s109
      %p116 = scmp.eq.s32.totalorder %s24, 5
      %p117 = por %p115, %p116
      %p118 = scmp.ne.s32.totalorder %s109, %s110
      %p119 = scmp.eq.s32.totalorder %s24, 0
      %p120 = por %p118, %p119
      %p121 = scmp.ne.s32.totalorder %s109, %s110
      %p122 = scmp.eq.s32.totalorder %s25, 5
      %p123 = por %p121, %p122
      %p125 = scmp.ne.s32.totalorder %s110, %s124
      %p126 = scmp.eq.s32.totalorder %s25, 0
      %p127 = por %p125, %p126
      %s129 = sadd.s32 %s128, 1
      %p132 = scmp.eq.s32.totalorder %s19, 5
      %p133 = scmp.ne.s32.totalorder %s128, %s130
      %p134 = scmp.eq.s32.totalorder %s19, 0
      %p135 = por %p133, %p134
      %p136 = scmp.ne.s32.totalorder %s128, %s130
      %p137 = scmp.eq.s32.totalorder %s24, 5
      %p138 = por %p136, %p137
      %p139 = scmp.ne.s32.totalorder %s130, %s131
      %p140 = scmp.eq.s32.totalorder %s24, 0
      %p141 = por %p139, %p140
      %p142 = scmp.ne.s32.totalorder %s130, %s131
      %p143 = scmp.eq.s32.totalorder %s25, 5
      %p144 = por %p142, %p143
      %p146 = scmp.ne.s32.totalorder %s131, %s145
      %p147 = scmp.eq.s32.totalorder %s25, 0
      %p148 = por %p146, %p147
      %s150 = sadd.s32 %s149, 1
      %p153 = scmp.eq.s32.totalorder %s19, 5
      %p154 = scmp.ne.s32.totalorder %s149, %s151
      %p155 = scmp.eq.s32.totalorder %s19, 0
      %p156 = por %p154, %p155
      %p157 = scmp.ne.s32.totalorder %s149, %s151
      %p158 = scmp.eq.s32.totalorder %s24, 5
      %p159 = por %p157, %p158
      %p160 = scmp.ne.s32.totalorder %s151, %s152
      %p161 = scmp.eq.s32.totalorder %s24, 0
      %p162 = por %p160, %p161
      %p163 = scmp.ne.s32.totalorder %s151, %s152
      %p164 = scmp.eq.s32.totalorder %s25, 5
      %p165 = por %p163, %p164
      %p167 = scmp.ne.s32.totalorder %s152, %s166
      %p168 = scmp.eq.s32.totalorder %s25, 0
      %p169 = por %p167, %p168
      %s171 = sadd.s32 %s170, 1
      %p174 = scmp.eq.s32.totalorder %s19, 5
      %p175 = scmp.ne.s32.totalorder %s170, %s172
      %p176 = scmp.eq.s32.totalorder %s19, 0
      %p177 = por %p175, %p176
      %p178 = scmp.ne.s32.totalorder %s170, %s172
      %p179 = scmp.eq.s32.totalorder %s24, 5
      %p180 = por %p178, %p179
      %p181 = scmp.ne.s32.totalorder %s172, %s173
      %p182 = scmp.eq.s32.totalorder %s24, 0
      %p183 = por %p181, %p182
      %p184 = scmp.ne.s32.totalorder %s172, %s173
      %p185 = scmp.eq.s32.totalorder %s25, 5
      %p186 = por %p184, %p185
      %p188 = scmp.ne.s32.totalorder %s173, %s187
      %p189 = scmp.eq.s32.totalorder %s25, 0
      %p190 = por %p188, %p189
      %s191 = ssub.s32 %s26, %s38
      %s192 = ssub.s32 %s27, %s34
      %s193 = sor.u32 %s191, %s192
      %p194 = scmp.eq.s32.totalorder %s193, 0
      %s196 = sadd.s32 %s195, 1
      %s197 = scalar_select %p194, %s195, %s196
      %p200 = pneg %p194
      %p201 = scmp.eq.s32.totalorder %s19, 5
      %p202 = por %p200, %p201
      %p203 = scmp.ne.s32.totalorder %s195, %s198
      %p204 = scmp.eq.s32.totalorder %s19, 0
      %p205 = por %p203, %p204
      %p206 = scmp.ne.s32.totalorder %s195, %s198
      %p207 = scmp.eq.s32.totalorder %s24, 5
      %p208 = por %p206, %p207
      %p209 = scmp.ne.s32.totalorder %s198, %s199
      %p210 = scmp.eq.s32.totalorder %s24, 0
      %p211 = por %p209, %p210
      %p212 = scmp.ne.s32.totalorder %s198, %s199
      %p213 = scmp.eq.s32.totalorder %s25, 5
      %p214 = por %p212, %p213
      %p216 = scmp.ne.s32.totalorder %s199, %s215
      %p217 = scmp.eq.s32.totalorder %s25, 0
      %p218 = por %p216, %p217
      %p219 = scmp.le.s32.totalorder 1, %s19
      %p220 = scmp.lt.s32.totalorder %s19, 7
      %p221 = pnand %p219, %p220
      %p222 = pneg %p221
      // Predicated region
      $region9: #{tpu_custom_call.1} parent=5 // pred_check
        _
      $region10: #{tpu_custom_call.1} parent=5 // pred_check_branch
        %224 = sbr.rel (%p221) target = $region12
      $region11: #{tpu_custom_call.1} parent=5 // pred_region
        %s225 = ssub.s32 %s19, 1
        // Predicated region
        $region13: #{tpu_custom_call.1} parent=11 // pred_check
          %p226 = pneg %p78
        $region14: #{tpu_custom_call.1} parent=11 // pred_check_branch
          %228 = sbr.rel (%p226) target = $region16
        $region15: #{tpu_custom_call.1} parent=11 // pred_region
          _
        $region16: #{tpu_custom_call.1} parent=11 // pred_fallthru
          _
        // Predicated region
        $region17: #{tpu_custom_call.1} parent=11 // pred_check
          %p229 = pneg %p99
        $region18: #{tpu_custom_call.1} parent=11 // pred_check_branch
          %231 = sbr.rel (%p229) target = $region20
        $region19: #{tpu_custom_call.1} parent=11 // pred_region
          _
        $region20: #{tpu_custom_call.1} parent=11 // pred_fallthru
          _
        // Predicated region
        $region21: #{tpu_custom_call.1} parent=11 // pred_check
          %p232 = pneg %p120
        $region22: #{tpu_custom_call.1} parent=11 // pred_check_branch
          %234 = sbr.rel (%p232) target = $region24
        $region23: #{tpu_custom_call.1} parent=11 // pred_region
          _
        $region24: #{tpu_custom_call.1} parent=11 // pred_fallthru
          _
        // Predicated region
        $region25: #{tpu_custom_call.1} parent=11 // pred_check
          %p235 = pneg %p141
        $region26: #{tpu_custom_call.1} parent=11 // pred_check_branch
          %237 = sbr.rel (%p235) target = $region28
        $region27: #{tpu_custom_call.1} parent=11 // pred_region
          _
        $region28: #{tpu_custom_call.1} parent=11 // pred_fallthru
          _
        // Predicated region
        $region29: #{tpu_custom_call.1} parent=11 // pred_check
          %p238 = pneg %p162
        $region30: #{tpu_custom_call.1} parent=11 // pred_check_branch
          %240 = sbr.rel (%p238) target = $region32
        $region31: #{tpu_custom_call.1} parent=11 // pred_region
          _
        $region32: #{tpu_custom_call.1} parent=11 // pred_fallthru
          _
        // Predicated region
        $region33: #{tpu_custom_call.1} parent=11 // pred_check
          %p241 = pneg %p183
        $region34: #{tpu_custom_call.1} parent=11 // pred_check_branch
          %243 = sbr.rel (%p241) target = $region36
        $region35: #{tpu_custom_call.1} parent=11 // pred_region
          _
        $region36: #{tpu_custom_call.1} parent=11 // pred_fallthru
          _
      $region12: #{tpu_custom_call.1} parent=5 // pred_fallthru
        _
      %p244 = scmp.lt.s32.totalorder %s19, 6
      // Predicated region
      $region37: #{tpu_custom_call.1} parent=5 // pred_check
        %p245 = pneg %p244
      $region38: #{tpu_custom_call.1} parent=5 // pred_check_branch
        %247 = sbr.rel (%p245) target = $region40
      $region39: #{tpu_custom_call.1} parent=5 // pred_region
        // Predicated region
        $region41: #{tpu_custom_call.1} parent=39 // pred_check
          %p248 = pneg %p51
        $region42: #{tpu_custom_call.1} parent=39 // pred_check_branch
          %250 = sbr.rel (%p248) target = $region44
        $region43: #{tpu_custom_call.1} parent=39 // pred_region
          %s251 = sand.u32 %s41, 1
          %s252 = scalar_lea.sflag [#allocation3], %s251
          %s253 = sand.u32 %s41, 1
          %s254 = smul.addr %s253, 48
          %s255 = scalar_lea.vmem [#allocation2], %s254
          %s257 = ssub.s32 768, 768
          %258 = vsyncadd %s252, %s257
          %s259 = smul.addr %s26, 6
          %s260 = smul.addr %s259, 128
          %s261 = scalar_lea.hbm %s0, %s260
          %s262 = sshll.u32 %s255, 4
          %s263 = int_to_ptr.vmem [resolvable:$true] %s262
          %268 = dma.hbm_to_vmem [thread:$0]  %s261, 768, %s263, %s252, 384, 384, 24
        $region44: #{tpu_custom_call.1} parent=39 // pred_fallthru
          _
      $region40: #{tpu_custom_call.1} parent=5 // pred_fallthru
        _
      %p269 = scmp.le.s32.totalorder 1, %s19
      %p270 = scmp.lt.s32.totalorder %s19, 7
      %p271 = pnand %p269, %p270
      %p272 = pneg %p271
      // Predicated region
      $region45: #{tpu_custom_call.1} parent=5 // pred_check
        _
      $region46: #{tpu_custom_call.1} parent=5 // pred_check_branch
        %274 = sbr.rel (%p271) target = $region48
      $region47: #{tpu_custom_call.1} parent=5 // pred_region
        %s275 = ssub.s32 %s19, 1
        %s276 = sand.u32 %s44, 1
        %s277 = scalar_lea.sflag [#allocation3], %s276
        %s278 = sand.u32 %s44, 1
        %s279 = smul.addr %s278, 48
        %s280 = scalar_lea.vmem [#allocation2], %s279
        // Predicated region
        $region49: #{tpu_custom_call.1} parent=47 // pred_check
          %p281 = pneg %p57
        $region50: #{tpu_custom_call.1} parent=47 // pred_check_branch
          %283 = sbr.rel (%p281) target = $region52
        $region51: #{tpu_custom_call.1} parent=47 // pred_region
          %284 = dma.done %s277, 768
        $region52: #{tpu_custom_call.1} parent=47 // pred_fallthru
          _
        %s285 = sand.u32 %s44, 1
        %s286 = scalar_lea.sflag [#allocation3], %s285
        %s287 = sand.u32 %s44, 1
        %s288 = smul.addr %s287, 48
        %s289 = scalar_lea.vmem [#allocation2], %s288
        %p290 = pneg %p57
        %p291 = pneg %p54
        %p292 = pneg %p78
        %p293 = pneg %p75
        %p294 = pneg %p99
        %p295 = pneg %p96
        %p296 = pneg %p120
        %p297 = pneg %p117
        %p298 = pneg %p141
        %p299 = pneg %p138
        %p300 = pneg %p162
        %p301 = pneg %p159
        %p302 = pneg %p183
        %p303 = pneg %p180
        %p304 = pneg %p211
        %p305 = pneg %p208
        %s306 = sand.u32 %s198, 1
        %s307 = scalar_lea.sflag [#allocation4], %s306
        %s308 = sand.u32 %s198, 1
        %s309 = smul.addr %s308, 8
        %s310 = scalar_lea.vmem [#allocation5], %s309
        %s312 = smul.u32 %s29, 128
        %s313 = ssub.s32 %s312, 128
        %p314 = scmp.ge.s32.totalorder %s313, 0
        %p315 = scmp.lt.s32.totalorder %s313, 16
        %p316 = pnand %p314, %p315
        %p317 = pneg %p316
        // Predicated region
        $region53: #{tpu_custom_call.1} parent=47 // pred_check
          _
        $region54: #{tpu_custom_call.1} parent=47 // pred_check_branch
          %319 = sbr.rel (%p316) target = $region56
        $region55: #{tpu_custom_call.1} parent=47 // pred_region
          %s320 = sshra.s32 %s313, 7
          %s321 = sand.u32 %s313, 127
          %s322 = smul.addr %s320, 8
          %s323 = scalar_lea.vmem %s280, %s322 [#allocation2]
          %v324 = vld [vmem:[%s323] sm:$0xff]
          %v325 = vld [vmem:[%s323 + $0x8] sm:$0xff]
          %v326 = vld [vmem:[%s323 + $0x10] sm:$0xff]
          %v327 = vld [vmem:[%s323 + $0x18] sm:$0xff]
          %v328 = vld [vmem:[%s323 + $0x20] sm:$0xff]
          %v329 = vld [vmem:[%s323 + $0x28] sm:$0xff]
          %v330 = vmul.f32 %v324, 0.5
          %v331 = vmul.f32 %v325, 0.5
          %v332 = vmul.f32 %v326, 0.5
          %v333 = vmul.f32 %v327, 0.5
          %v334 = vmul.f32 %v328, 0.5
          %v335 = vmul.f32 %v329, 0.5
          %v336 = vmul.f32 %v324, 0.70710677
          %v337 = vmul.f32 %v325, 0.70710677
          %v338 = vmul.f32 %v326, 0.70710677
          %v339 = vmul.f32 %v327, 0.70710677
          %v340 = vmul.f32 %v328, 0.70710677
          %v341 = vmul.f32 %v329, 0.70710677
          %v342 = verf.f32.pop %v336
          %v343 = verf.f32.pop %v337
          %v344 = verf.f32.pop %v338
          %v345 = verf.f32.pop %v339
          %v346 = verf.f32.pop %v340
          %v347 = verf.f32.pop %v341
          %v348 = vadd.f32 %v342, 1.0
          %v349 = vadd.f32 %v343, 1.0
          %v350 = vadd.f32 %v344, 1.0
          %v351 = vadd.f32 %v345, 1.0
          %v352 = vadd.f32 %v346, 1.0
          %v353 = vadd.f32 %v347, 1.0
          %v354 = vmul.f32 %v330, %v348
          %v355 = vmul.f32 %v331, %v349
          %v356 = vmul.f32 %v332, %v350
          %v357 = vmul.f32 %v333, %v351
          %v358 = vmul.f32 %v334, %v352
          %v359 = vmul.f32 %v335, %v353
          %v360 = vpack.c.bf16 %v357, %v354
          %v361 = vpack.c.bf16 %v358, %v355
          %v362 = vpack.c.bf16 %v359, %v356
          %366 = vrot.lane.b32.xlu0 %v360, 127
          %v367 = vpop.permute.xlu0 %366
          %368 = vrot.lane.b32.xlu0 %v361, 127
          %v369 = vpop.permute.xlu0 %368
          %370 = vrot.lane.b32.xlu0 %v362, 127
          %v371 = vpop.permute.xlu0 %370
          %vm372 = vcmask 1039360
          %v373 = vsel %vm372, %v367, %v369
          %v374 = vsel %vm372, %v369, %v371
          %375 = vrot.lane.b32.xlu0 %v361, 126
          %v376 = vpop.permute.xlu0 %375
          %377 = vrot.lane.b32.xlu0 %v362, 126
          %v378 = vpop.permute.xlu0 %377
          %vm379 = vcmask 1031168
          %v380 = vsel %vm379, %v376, %v378
          %v381 = vld [vmem:[%s1] sm:$0xf]
          %v382 = vld [vmem:[%s1 + $0x4] sm:$0xf]
          %v383 = vld [vmem:[%s2] sm:$0xff]
          %v384 = vld [vmem:[%s2 + $0x8] sm:$0xff]
          %386 = vset.pattern.permute.xlu0 0
          %387 = vperm.xlu0 %386, %v383
          %v388 = vpop.permute.xlu0 %387
          %391 = vset.pattern.permute.xlu0 0
          %392 = vperm.xlu0 %391, %v384
          %v393 = vpop.permute.xlu0 %392
          %v397 = vunpack.c.l.b16 %v381
          %v398 = vunpack.c.l.b16 %v382
          %v399 = vpack.c.b16 %v398, %v397
          %400 = vrot.lane.b32.xlu0 %v360, 2
          %v401 = vpop.permute.xlu0 %400
          %402 = vrot.lane.b32.xlu0 %v361, 2
          %v403 = vpop.permute.xlu0 %402
          %404 = vrot.lane.b32.xlu0 %v373, 2
          %v405 = vpop.permute.xlu0 %404
          %406 = vrot.lane.b32.xlu0 %v374, 2
          %v407 = vpop.permute.xlu0 %406
          %408 = vrot.lane.b32.xlu0 %v376, 2
          %v409 = vpop.permute.xlu0 %408
          %410 = vrot.lane.b32.xlu0 %v380, 2
          %v411 = vpop.permute.xlu0 %410
          %vm412 = vcmask 15360
          %v413 = vsel %vm412, %v401, %v403
          %v414 = vsel %vm412, %v405, %v407
          %v415 = vsel %vm412, %v409, %v411
          %vm422 = vcmask 392192
          %v424 = vsel %vm422, %v399, 0
          %426 = vmatprep.subr.bf16.mxu0 0
          %427 = vmatpush1.bf16.msra.mxu0 0
          %428 = vmatprep.subr.bf16.mxu0 0
          %429 = vmatpush1.bf16.msra.mxu0 0
          %430 = vmatprep.subr.bf16.mxu0 0
          %431 = vmatpush1.bf16.msra.mxu0 0
          %432 = vmatprep.subr.bf16.mxu0 0
          %433 = vmatpush1.bf16.msra.mxu0 0
          %434 = vmatprep.subr.bf16.mxu0 0
          %435 = vmatpush1.bf16.msra.mxu0 0
          %436 = vmatprep.subr.bf16.mxu0 %v411
          %437 = vmatpush1.bf16.msra.mxu0 %v415
          %438 = vmatprep.subr.bf16.mxu0 %v407
          %439 = vmatpush1.bf16.msra.mxu0 %v414
          %440 = vmatprep.subr.bf16.mxu0 %v403
          %441 = vmatpush1.bf16.msra.mxu0 %v413
          %442 = vmatprep.subr.bf16.mxu0 0
          %443 = vmatpush2.bf16.msra.mxu0 0
          %444 = vmatprep.subr.bf16.mxu0 0
          %445 = vmatpush2.bf16.msra.mxu0 0
          %446 = vmatprep.subr.bf16.mxu0 0
          %447 = vmatpush2.bf16.msra.mxu0 0
          %448 = vmatprep.subr.bf16.mxu0 0
          %449 = vmatpush2.bf16.msra.mxu0 0
          %450 = vmatprep.subr.bf16.mxu0 0
          %451 = vmatpush2.bf16.msra.mxu0 0
          %452 = vmatprep.subr.bf16.mxu0 0
          %453 = vmatpush2.bf16.msra.mxu0 0
          %454 = vmatprep.subr.bf16.mxu0 0
          %455 = vmatpush2.bf16.msra.mxu0 0
          %456 = vmatprep.subr.bf16.mxu0 0
          %457 = vmatpush2.bf16.msra.mxu0 0
          %458 = vmatprep.mubr.bf16.mxu0 0
          %459 = vmatmul.mubr.bf16.gmra.mxu0 %v424
          %v460 = vpop.f32.mrf.mxu0
          %v461 = vadd.f32 %v388, %v460
          %v462 = vpop.f32.mrf.mxu0
          %v463 = vadd.f32 %v388, %v462
          %v464 = vpop.f32.mrf.mxu0
          %v465 = vadd.f32 %v393, %v464
          %v466 = vpop.f32.mrf.mxu0
          %v467 = vadd.f32 %v393, %v466
          %468 = vdwg.mxu0
          %v469 = vlaneseq
          %v470 = vand.u32 %v469, 127
          %v471 = vadd.s32 %v470, 128
          %s472 = ssub.s32 %s312, 129
          %v473 = vstv %s472
          %v474 = vadd.s32 %v470, %v473
          %v475 = vadd.s32 %v471, %v473
          %vm476 = vcmp.ge.s32.totalorder %v474, 0
          %vm477 = vcmp.ge.s32.totalorder %v475, 0
          %vm478 = vcmp.lt.s32.totalorder %v474, 16
          %vm479 = vcmp.lt.s32.totalorder %v475, 16
          %vm480 = vmand %vm476, %vm478
          %vm481 = vmand %vm477, %vm479
          %v482 = vmul.f32 %v461, 0.5
          %v483 = vmul.f32 %v463, 0.5
          %v484 = vmul.f32 %v465, 0.5
          %v485 = vmul.f32 %v467, 0.5
          %v486 = vmul.f32 %v461, 0.70710677
          %v487 = vmul.f32 %v463, 0.70710677
          %v488 = vmul.f32 %v465, 0.70710677
          %v489 = vmul.f32 %v467, 0.70710677
          %v490 = verf.f32.pop %v486
          %v491 = verf.f32.pop %v487
          %v492 = verf.f32.pop %v488
          %v493 = verf.f32.pop %v489
          %v494 = vadd.f32 %v490, 1.0
          %v495 = vadd.f32 %v491, 1.0
          %v496 = vadd.f32 %v492, 1.0
          %v497 = vadd.f32 %v493, 1.0
          %v498 = vmul.f32 %v482, %v494
          %v499 = vmul.f32 %v483, %v495
          %v500 = vmul.f32 %v484, %v496
          %v501 = vmul.f32 %v485, %v497
          %v502 = vsel %vm480, 1, 0
          %v503 = vsel %vm481, 1, 0
          %vm504 = vcmp.eq.s32.totalorder %v502, 1
          %vm505 = vcmp.eq.s32.totalorder %v503, 1
          %v506 = vsel %vm504, %v498, 0.0
          %v507 = vsel %vm505, %v499, 0.0
          %v508 = vsel %vm504, %v500, 0.0
          %v509 = vsel %vm505, %v501, 0.0
          %v510 = vpack.c.bf16 %v508, %v506
          %v511 = vpack.c.bf16 %v509, %v507
          %514 = vrot.lane.b32.xlu0 %v510, 127
          %v515 = vpop.permute.xlu0 %514
          %516 = vrot.lane.b32.xlu0 %v511, 127
          %v517 = vpop.permute.xlu0 %516
          %v518 = vsel %vm372, %v515, %v517
          %520 = vrot.lane.b32.xlu0 %v510, 126
          %v521 = vpop.permute.xlu0 %520
          %522 = vrot.lane.b32.xlu0 %v511, 126
          %v523 = vpop.permute.xlu0 %522
          %v524 = vsel %vm379, %v521, %v523
          %v526 = vld [vmem:[%s3] sm:$0xf]
          %v527 = vld [vmem:[%s3 + $0x4] sm:$0xf]
          %v528 = vld [vmem:[%s4] sm:$0xff]
          %v529 = vld [vmem:[%s4 + $0x8] sm:$0xff]
          %531 = vset.pattern.permute.xlu0 0
          %532 = vperm.xlu0 %531, %v528
          %v533 = vpop.permute.xlu0 %532
          %536 = vset.pattern.permute.xlu0 0
          %537 = vperm.xlu0 %536, %v529
          %v538 = vpop.permute.xlu0 %537
          %v542 = vunpack.c.l.b16 %v526
          %v543 = vunpack.c.l.b16 %v527
          %v544 = vpack.c.b16 %v543, %v542
          %v546 = vsel %vm422, %v544, 0
          %548 = vmatprep.subr.bf16.mxu0 0
          %549 = vmatpush1.bf16.msra.mxu0 0
          %550 = vmatprep.subr.bf16.mxu0 0
          %551 = vmatpush1.bf16.msra.mxu0 0
          %552 = vmatprep.subr.bf16.mxu0 0
          %553 = vmatpush1.bf16.msra.mxu0 0
          %554 = vmatprep.subr.bf16.mxu0 0
          %555 = vmatpush1.bf16.msra.mxu0 0
          %556 = vmatprep.subr.bf16.mxu0 0
          %557 = vmatpush1.bf16.msra.mxu0 0
          %558 = vmatprep.subr.bf16.mxu0 0
          %559 = vmatpush1.bf16.msra.mxu0 %v524
          %560 = vmatprep.subr.bf16.mxu0 0
          %561 = vmatpush1.bf16.msra.mxu0 %v518
          %562 = vmatprep.subr.bf16.mxu0 0
          %563 = vmatpush1.bf16.msra.mxu0 %v510
          %564 = vmatprep.subr.bf16.mxu0 0
          %565 = vmatpush2.bf16.msra.mxu0 0
          %566 = vmatprep.subr.bf16.mxu0 0
          %567 = vmatpush2.bf16.msra.mxu0 0
          %568 = vmatprep.subr.bf16.mxu0 0
          %569 = vmatpush2.bf16.msra.mxu0 0
          %570 = vmatprep.subr.bf16.mxu0 0
          %571 = vmatpush2.bf16.msra.mxu0 0
          %572 = vmatprep.subr.bf16.mxu0 0
          %573 = vmatpush2.bf16.msra.mxu0 0
          %574 = vmatprep.subr.bf16.mxu0 0
          %575 = vmatpush2.bf16.msra.mxu0 0
          %576 = vmatprep.subr.bf16.mxu0 0
          %577 = vmatpush2.bf16.msra.mxu0 0
          %578 = vmatprep.subr.bf16.mxu0 0
          %579 = vmatpush2.bf16.msra.mxu0 0
          %580 = vmatprep.mubr.bf16.mxu0 0
          %581 = vmatmul.mubr.bf16.gmra.mxu0 %v546
          %v582 = vpop.f32.mrf.mxu0
          %v583 = vadd.f32 %v533, %v582
          %v584 = vpop.f32.mrf.mxu0
          %v585 = vpop.f32.mrf.mxu0
          %v586 = vadd.f32 %v538, %v585
          %v587 = vpop.f32.mrf.mxu0
          %588 = vdwg.mxu0
          %v589 = vld [vmem:[%s5] sm:$0xf]
          %v590 = vld [vmem:[%s5 + $0x4] sm:$0xf]
          %v591 = vpack.c.bf16 %v328, %v325
          %v592 = vld [vmem:[%s6] sm:$0xff]
          %v593 = vld [vmem:[%s6 + $0x8] sm:$0xff]
          %595 = vset.pattern.permute.xlu0 0
          %596 = vperm.xlu0 %595, %v592
          %v597 = vpop.permute.xlu0 %596
          %600 = vset.pattern.permute.xlu0 0
          %601 = vperm.xlu0 %600, %v593
          %v602 = vpop.permute.xlu0 %601
          %v606 = vunpack.c.l.b16 %v589
          %v607 = vunpack.c.l.b16 %v590
          %v608 = vpack.c.b16 %v607, %v606
          %vm609 = vcmask 130048
          %v611 = vsel %vm609, %v608, 0
          %613 = vmatprep.subr.bf16.mxu0 0
          %614 = vmatpush1.bf16.msra.mxu0 0
          %615 = vmatprep.subr.bf16.mxu0 0
          %616 = vmatpush1.bf16.msra.mxu0 0
          %617 = vmatprep.subr.bf16.mxu0 0
          %618 = vmatpush1.bf16.msra.mxu0 0
          %619 = vmatprep.subr.bf16.mxu0 0
          %620 = vmatpush1.bf16.msra.mxu0 0
          %621 = vmatprep.subr.bf16.mxu0 0
          %622 = vmatpush1.bf16.msra.mxu0 0
          %623 = vmatprep.subr.bf16.mxu0 0
          %624 = vmatpush1.bf16.msra.mxu0 0
          %625 = vmatprep.subr.bf16.mxu0 0
          %626 = vmatpush1.bf16.msra.mxu0 0
          %627 = vmatprep.subr.bf16.mxu0 0
          %628 = vmatpush1.bf16.msra.mxu0 %v591
          %629 = vmatprep.subr.bf16.mxu0 0
          %630 = vmatpush2.bf16.msra.mxu0 0
          %631 = vmatprep.subr.bf16.mxu0 0
          %632 = vmatpush2.bf16.msra.mxu0 0
          %633 = vmatprep.subr.bf16.mxu0 0
          %634 = vmatpush2.bf16.msra.mxu0 0
          %635 = vmatprep.subr.bf16.mxu0 0
          %636 = vmatpush2.bf16.msra.mxu0 0
          %637 = vmatprep.subr.bf16.mxu0 0
          %638 = vmatpush2.bf16.msra.mxu0 0
          %639 = vmatprep.subr.bf16.mxu0 0
          %640 = vmatpush2.bf16.msra.mxu0 0
          %641 = vmatprep.subr.bf16.mxu0 0
          %642 = vmatpush2.bf16.msra.mxu0 0
          %643 = vmatprep.subr.bf16.mxu0 0
          %644 = vmatpush2.bf16.msra.mxu0 0
          %645 = vmatprep.mubr.bf16.mxu0 0
          %646 = vmatmul.mubr.bf16.gmra.mxu0 %v611
          %v647 = vpop.f32.mrf.mxu0
          %v648 = vadd.f32 %v597, %v647
          %v649 = vpop.f32.mrf.mxu0
          %v650 = vpop.f32.mrf.mxu0
          %v651 = vadd.f32 %v602, %v650
          %v652 = vpop.f32.mrf.mxu0
          %653 = vdwg.mxu0
          %v654 = vstv %s313
          %v655 = vadd.s32 %v470, %v654
          %vm656 = vcmp.lt.s32.totalorder %v655, 16
          %v657 = vadd.f32 %v583, %v648
          %v658 = vadd.f32 %v586, %v651
          %v659 = vsel %vm656, 1, 0
          %vm660 = vcmp.eq.s32.totalorder %v659, 1
          %v661 = vsel %vm660, %v657, 0.0
          %v662 = vsel %vm660, %v658, 0.0
          %v663 = vpack.c.bf16 %v662, %v661
          %v665 = vunpack.c.l.b16 %v663
          %v666 = vunpack.c.h.b16 %v663
          %v667 = vpack.c.b16 %v665, %v665
          %v668 = vpack.c.b16 %v666, %v666
          %671 = vst [vmem:[%s310] sm:$0xf] %v667
          %672 = vst [vmem:[%s310 + $0x4] sm:$0xf] %v668
        $region56: #{tpu_custom_call.1} parent=47 // pred_fallthru
          _
        // Predicated region
        $region57: #{tpu_custom_call.1} parent=47 // pred_check
          %p673 = pneg %p316
        $region58: #{tpu_custom_call.1} parent=47 // pred_check_branch
          %675 = sbr.rel (%p673) target = $region60
        $region59: #{tpu_custom_call.1} parent=47 // pred_region
          %676 = vst [vmem:[%s310] sm:$0xf] 0
          %677 = vst [vmem:[%s310 + $0x4] sm:$0xf] 0
        $region60: #{tpu_custom_call.1} parent=47 // pred_fallthru
          _
        %s678 = sand.u32 %s198, 1
        %s679 = scalar_lea.sflag [#allocation4], %s678
        %s680 = sand.u32 %s198, 1
        %s681 = smul.addr %s680, 8
        %s682 = scalar_lea.vmem [#allocation5], %s681
        // Predicated region
        $region61: #{tpu_custom_call.1} parent=47 // pred_check
          %p683 = pneg %p208
        $region62: #{tpu_custom_call.1} parent=47 // pred_check_branch
          %685 = sbr.rel (%p683) target = $region64
        $region63: #{tpu_custom_call.1} parent=47 // pred_region
          %s687 = ssub.s32 128, 128
          %688 = vsyncadd %s679, %s687
          %s689 = smul.addr %s28, 6
          %s690 = sadd.s32 %s29, %s689
          %s691 = smul.addr %s690, 64
          %s692 = scalar_lea.hbm %s7, %s691
          %s693 = sshll.u32 %s682, 4
          %s694 = int_to_ptr.vmem [resolvable:$true] %s693
          %699 = dma.vmem_to_hbm [thread:$0]  %s694, 128, %s692, %s679, 64, 192, 4
        $region64: #{tpu_custom_call.1} parent=47 // pred_fallthru
          _
      $region48: #{tpu_custom_call.1} parent=5 // pred_fallthru
        _
      %p700 = scmp.le.s32.totalorder 2, %s19
      // Predicated region
      $region65: #{tpu_custom_call.1} parent=5 // pred_check
        %p701 = pneg %p700
      $region66: #{tpu_custom_call.1} parent=5 // pred_check_branch
        %703 = sbr.rel (%p701) target = $region68
      $region67: #{tpu_custom_call.1} parent=5 // pred_region
        %s704 = ssub.s32 %s19, 2
        // Predicated region
        $region69: #{tpu_custom_call.1} parent=67 // pred_check
          %p705 = pneg %p214
        $region70: #{tpu_custom_call.1} parent=67 // pred_check_branch
          %707 = sbr.rel (%p705) target = $region72
        $region71: #{tpu_custom_call.1} parent=67 // pred_region
          %s708 = sand.u32 %s199, 1
          %s709 = scalar_lea.sflag [#allocation4], %s708
          %s710 = sand.u32 %s199, 1
          %s711 = smul.addr %s710, 8
          %s712 = scalar_lea.vmem [#allocation5], %s711
          %713 = dma.done %s709, 128
        $region72: #{tpu_custom_call.1} parent=67 // pred_fallthru
          _
      $region68: #{tpu_custom_call.1} parent=5 // pred_fallthru
        _
    $region6: #{tpu_custom_call.1} parent=1 // loop_footer
      %s23 = sadd.s32 1, %s19
    $region7: #{tpu_custom_call.1} parent=1 // loop_footer_branch
      %18 = sbr.rel target = $region3
    $region8: #{tpu_custom_call.1} parent=1 // loop_exit
      _
    %714 = vsyncpa [#allocation3], 1
    %s715 = scalar_lea.sflag [#allocation3], 1
    %716 = vsyncpa %s715, 1
    %717 = vsyncpa [#allocation4], 1
    %s718 = scalar_lea.sflag [#allocation4], 1
    %719 = vsyncpa %s718, 1

</llo_original>
